<compile_context>
chip_gen: v6e
topology: v6e:2x2x1
jax: 0.10.0
libtpu: 0.0.40
codegen_flags: <defaults>
</compile_context>

<pallas_src>
import math

import jax
import jax.numpy as jnp
import numpy as np
from jax import lax
from jax.experimental import pallas as pl
from jax.experimental.pallas import tpu as pltpu


def sme_kernel(x_ref, w_ref, shift_ref, o_ref, gate_ref):
    # x_ref:     (T, C, HWt) input dtype (bf16/f32) — one batch element, one HW tile
    # w_ref:     (Cout, Cin) matmul dtype            — conv weight with BN scale folded
    # shift_ref: (Cout, 1)   f32                     — folded conv-bias + BN shift
    # o_ref:     (T, C, HWt) output dtype
    # gate_ref:  (T, HWt)    f32 VMEM scratch        — per-frame (1 - cosine sim)
    t_seg, _c, _hw_t = x_ref.shape
    eps2 = 1e-16                 # == (1e-8)**2 ; F.cosine_similarity clamps norms at 1e-8
    unroll = t_seg < 8           # small T: unroll for LLO visibility; T>=8: rolled loop

    w = w_ref[...]               # (Cout, Cin), matmul dtype (bf16 default)
    # Hoisted (C,1) load; kept narrow and lane-splat into the add below instead of a
    # resident (C, HWt) f32 broadcast that would pin C*HWt*4 bytes of VMEM per block.
    shift = shift_ref[...]

    # ---- Phase 1: adjacent-frame cosine gates -> gate_ref ---------------------------
    # Per-pair loop bounds temporaries to one (C, HWt) frame (no (T,C,HWt) x*x block);
    # each frame's squared norm is computed once and carried to the next pair.
    x0 = x_ref[0].astype(jnp.float32)
    n0 = jnp.sum(x0 * x0, axis=0, keepdims=True)                 # (1, HWt) f32

    def gate_body(t, nl2):
        xl = x_ref[t].astype(jnp.float32)                        # (C, HWt)
        xr = x_ref[t + 1].astype(jnp.float32)
        nr2 = jnp.sum(xr * xr, axis=0, keepdims=True)            # (1, HWt)
        dot = jnp.sum(xl * xr, axis=0, keepdims=True)
        inv = lax.rsqrt(jnp.maximum(nl2, eps2) * jnp.maximum(nr2, eps2))
        gate_ref[pl.ds(t, 1), :] = 1.0 - dot * inv               # 1 - cos_sim
        return nr2

    lax.fori_loop(0, t_seg - 1, gate_body, n0, unroll=unroll)
    # Last frame reuses the last pair's similarity (torch.cat([simi, simi[:, -1:]])).
    gate_ref[pl.ds(t_seg - 1, 1), :] = gate_ref[pl.ds(t_seg - 2, 1), :]

    # ---- Phase 2: per-frame 1x1 conv (MXU) + folded BN affine + residual ------------
    def frame_body(t, carry):
        x_t = x_ref[t]                                           # (C, HWt) input dtype
        xf = x_t.astype(jnp.float32)
        g = gate_ref[pl.ds(t, 1), :]                             # (1, HWt) f32
        mod = (xf * g).astype(w.dtype)                           # MXU input dtype
        conv = lax.dot_general(w, mod,
                               dimension_numbers=(((1,), (0,)), ((), ())),
                               preferred_element_type=jnp.float32)   # (Cout, HWt) f32
        o_ref[t] = (conv + shift + xf).astype(o_ref.dtype)
        return carry

    lax.fori_loop(0, t_seg, frame_body, 0, unroll=unroll)


def _default_vmem_limit_bytes():
    """~2/3 of physical VMEM (v7x 64 MiB -> ~44 MiB, v5e/v6e 128 MiB -> ~88 MiB)."""
    try:
        cap = int(pltpu.get_tpu_info().vmem_capacity_bytes)
        return (cap * 11) // 16
    except Exception:
        return 44 << 20   # safe under every generation's physical VMEM


def _pick_tile_hw(hw, n_segment, c, itemsize_in, itemsize_out, budget_bytes,
                  n_batch, min_grid_points=4):
    """HW tile: a multiple of 128 within the per-block I/O budget, covering hw in as
    few blocks as possible (at most one masked tail block — never shrink every tile
    hunting for an exact divisor), shrunk only if the grid would starve a v7x core."""
    if hw <= 128:
        # TODO(synk): hw < 128 leaves the lane axis under-filled (masked vst / short
        # DMA bursts). Fixing it needs an HBM-layout change (pad HW to 128 or move HW
        # off the innermost axis) coordinated with the producer/consumer layers.
        return hw
    per_col = n_segment * c * (itemsize_in + itemsize_out)       # I/O bytes per HW column
    cap = max(128, (budget_bytes // per_col) // 128 * 128)
    tile = min(cap, pl.cdiv(hw, 128) * 128)                      # one block if it fits
    # v7x has 2 TensorCores: keep enough parallel grid points rather than idle one.
    while n_batch * pl.cdiv(hw, tile) < min_grid_points and tile > 256:
        tile = max(256, ((tile // 2) + 127) // 128 * 128)
    return tile


def sme_forward(x_nchw, conv_w, conv_b, bn_gamma, bn_beta, bn_mean, bn_var,
                n_segment, bn_eps=1e-5, matmul_dtype=jnp.bfloat16, out_dtype=None,
                tile_hw=None, vmem_limit_bytes=None, block_budget_bytes=None):
    if n_segment < 2:
        raise ValueError("SME requires n_segment >= 2 (adjacent-frame similarity).")
    nt, c, h, w = x_nchw.shape
    if nt % n_segment:
        raise ValueError("batch*time must be divisible by n_segment")
    n_batch = nt // n_segment
    hw = h * w
    out_dtype = x_nchw.dtype if out_dtype is None else out_dtype

    # NCHW -> (N, T, C, HW): pure metadata reshape, no astype / no extra HBM pass.
    x = x_nchw.reshape(n_batch, n_segment, c, hw)

    # Fold eval-mode BatchNorm: scale into the weight, bias/mean/beta into a shift.
    scale = bn_gamma / jnp.sqrt(bn_var + bn_eps)                               # (C,)
    shift = (scale * (conv_b - bn_mean) + bn_beta).reshape(c, 1).astype(jnp.float32)
    # NOTE: keep matmul_dtype=bf16 in production (v5e has no native f32 MXU path);
    # accumulation is f32 via preferred_element_type either way.
    w_eff = (scale[:, None] * conv_w.reshape(c, c)).astype(matmul_dtype)       # (Cout, Cin)

    if vmem_limit_bytes is None:
        vmem_limit_bytes = _default_vmem_limit_bytes()
    if block_budget_bytes is None:
        block_budget_bytes = max(1 << 20, min(vmem_limit_bytes // 8, 8 << 20))
    if tile_hw is None:
        tile_hw = _pick_tile_hw(hw, n_segment, c, x.dtype.itemsize,
                                jnp.dtype(out_dtype).itemsize,
                                block_budget_bytes, n_batch)
    num_hw_tiles = pl.cdiv(hw, tile_hw)

    out = pl.pallas_call(
        sme_kernel,
        out_shape=jax.ShapeDtypeStruct((n_batch, n_segment, c, hw), out_dtype),
        grid_spec=pltpu.PrefetchScalarGridSpec(
            num_scalar_prefetch=0,
            grid=(n_batch, num_hw_tiles),
            in_specs=[
                pl.BlockSpec((None, n_segment, c, tile_hw),
                             lambda b, s: (b, 0, 0, s)),
                pl.BlockSpec((c, c), lambda b, s: (0, 0)),
                pl.BlockSpec((c, 1), lambda b, s: (0, 0)),
            ],
            out_specs=pl.BlockSpec((None, n_segment, c, tile_hw),
                                   lambda b, s: (b, 0, 0, s)),
            scratch_shapes=[pltpu.VMEM((n_segment, tile_hw), jnp.float32)],
        ),
        compiler_params=pltpu.CompilerParams(
            dimension_semantics=("parallel", "parallel"),
            vmem_limit_bytes=int(vmem_limit_bytes)),
    )(x, w_eff, shift)

    # (N, T, C, HW) -> NCHW (nt, c, h, w): pure metadata reshape again.
    return out.reshape(nt, c, h, w)


def sme_reference(x_nchw, conv_w, conv_b, bn_gamma, bn_beta, bn_mean, bn_var,
                  n_segment, bn_eps=1e-5):
    # Pure-JAX f32 mirror of the PyTorch forward (eval-mode BatchNorm).
    x_nchw = x_nchw.astype(jnp.float32)
    nt, c, h, w = x_nchw.shape
    n_batch = nt // n_segment
    x_p = x_nchw.reshape(n_batch, n_segment, c, h, w)
    xl = x_p[:, :-1].reshape(n_batch * (n_segment - 1), c, h * w)
    xr = x_p[:, 1:].reshape(n_batch * (n_segment - 1), c, h * w)
    eps = 1e-8
    dot = jnp.sum(xl * xr, axis=1)
    nl = jnp.sqrt(jnp.sum(xl * xl, axis=1))
    nr = jnp.sqrt(jnp.sum(xr * xr, axis=1))
    simi = dot / (jnp.maximum(nl, eps) * jnp.maximum(nr, eps))
    simi = simi.reshape(n_batch, n_segment - 1, h, w)
    simi = jnp.concatenate([simi, simi[:, -1:]], axis=1)
    x_p = x_p * (1 - simi[:, :, None])
    x_p = x_p.reshape(nt, c, h, w)
    conv = (jnp.einsum('oc,nchw->nohw', conv_w.reshape(c, c), x_p)
            + conv_b[None, :, None, None])
    bn = (bn_gamma[None, :, None, None]
          * (conv - bn_mean[None, :, None, None])
          / jnp.sqrt(bn_var[None, :, None, None] + bn_eps)
          + bn_beta[None, :, None, None])
    return bn + x_nchw


if __name__ == "__main__":
    key = jax.random.PRNGKey(0)
    n_batch, n_segment, c = 2, 8, 32
    nt = n_batch * n_segment
    k = jax.random.split(key, 7)

    # Conv2d(C, C, 1) weight ~ N(0, sqrt(2/(1*1*C))) as in the module's init.
    conv_w = jax.random.normal(k[1], (c, c, 1, 1), jnp.float32) * math.sqrt(2.0 / c)
    conv_b = 0.1 * jax.random.normal(k[2], (c,), jnp.float32)
    # NOTE: the module's init sets BN gamma=beta=0, which zeroes the W-branch
    # (output == x).  Use nonzero deterministic BN params so the kernel path is
    # actually exercised; the forward's semantics are unchanged.
    bn_gamma = 1.0 + 0.1 * jax.random.normal(k[3], (c,), jnp.float32)
    bn_beta = 0.1 * jax.random.normal(k[4], (c,), jnp.float32)
    bn_mean = 0.1 * jax.random.normal(k[5], (c,), jnp.float32)
    bn_var = jnp.abs(jax.random.normal(k[6], (c,), jnp.float32)) + 0.5
    params = (conv_w, conv_b, bn_gamma, bn_beta, bn_mean, bn_var)

    # --- Test 1: f32 I/O + f32 MXU (tight math check), 8x8 spatial -----------------
    x1 = jax.random.normal(k[0], (nt, c, 8, 8), jnp.float32)
    out1 = jax.block_until_ready(sme_forward(
        x1, *params, n_segment, matmul_dtype=jnp.float32, out_dtype=jnp.float32))
    ref1 = sme_reference(x1, *params, n_segment)
    np.testing.assert_allclose(np.asarray(out1), np.asarray(ref1), rtol=1e-3, atol=1e-3)

    # --- Test 2: bf16 in / bf16 out / bf16 MXU (production path, half HBM traffic) --
    x2 = x1.astype(jnp.bfloat16)
    out2 = jax.block_until_ready(sme_forward(x2, *params, n_segment))
    ref2 = sme_reference(x2, *params, n_segment)          # reference on the bf16-rounded input
    np.testing.assert_allclose(np.asarray(out2.astype(jnp.float32)), np.asarray(ref2),
                               rtol=5e-2, atol=5e-2)

    # --- Test 3: 14x14 spatial with tile_hw=128 -> multi-tile grid whose trailing
    #     block is lane-masked (verifies partial-block read/write semantics) ---------
    x3 = jax.random.normal(k[0], (nt, c, 14, 14), jnp.float32)
    out3 = jax.block_until_ready(sme_forward(
        x3, *params, n_segment, matmul_dtype=jnp.float32, out_dtype=jnp.float32,
        tile_hw=128))
    ref3 = sme_reference(x3, *params, n_segment)
    np.testing.assert_allclose(np.asarray(out3), np.asarray(ref3), rtol=1e-3, atol=1e-3)

    print("KERNEL_OK")
</pallas_src>

<mosaic_0001>
module attributes {stable_mosaic.version = 11 : i64} {
  func.func @sme_kernel(%arg0: i32, %arg1: i32, %arg2: memref<1x8x32x64xf32, #tpu.memory_space<vmem>>, %arg3: memref<32x32xf32, #tpu.memory_space<vmem>>, %arg4: memref<32x1xf32, #tpu.memory_space<vmem>>, %arg5: memref<1x8x32x64xf32, #tpu.memory_space<vmem>>, %arg6: memref<8x64xf32, #tpu.memory_space<vmem>>) attributes {dimension_semantics = [#tpu.dimension_semantics<parallel>, #tpu.dimension_semantics<parallel>], iteration_bounds = array<i64: 2, 1>, scalar_prefetch = 0 : i64, scratch_operands = 1 : i64, tpu.core_type = #tpu.core_type<tc>, window_params = [{transform_indices = @transform_0, window_bounds = array<i64: 1, 8, 32, 64>}, {pipeline_mode = #tpu.pipeline_mode<synchronous>, transform_indices = @transform_1, window_bounds = array<i64: 32, 32>}, {pipeline_mode = #tpu.pipeline_mode<synchronous>, transform_indices = @transform_2, window_bounds = array<i64: 32, 1>}, {transform_indices = @transform_3, window_bounds = array<i64: 1, 8, 32, 64>}]} {
    %c0 = arith.constant 0 : index
    %c0_0 = arith.constant 0 : index
    %0 = vector.load %arg3[%c0, %c0_0] : memref<32x32xf32, #tpu.memory_space<vmem>>, vector<32x32xf32>
    %c0_1 = arith.constant 0 : index
    %c0_2 = arith.constant 0 : index
    %1 = vector.load %arg4[%c0_1, %c0_2] : memref<32x1xf32, #tpu.memory_space<vmem>>, vector<32x1xf32>
    %c0_3 = arith.constant 0 : index
    %c0_4 = arith.constant 0 : index
    %c0_5 = arith.constant 0 : index
    %c0_6 = arith.constant 0 : index
    %2 = vector.load %arg2[%c0_3, %c0_4, %c0_5, %c0_6] : memref<1x8x32x64xf32, #tpu.memory_space<vmem>>, vector<1x1x32x64xf32>
    %3 = vector.shape_cast %2 : vector<1x1x32x64xf32> to vector<32x64xf32>
    %4 = arith.mulf %3, %3 : vector<32x64xf32>
    %cst = arith.constant dense<0.000000e+00> : vector<64xf32>
    %5 = vector.multi_reduction <add>, %4, %cst [0] : vector<32x64xf32> to vector<64xf32>
    %6 = vector.shape_cast %5 : vector<64xf32> to vector<1x64xf32>
    %c0_i32 = arith.constant 0 : i32
    %c7_i32 = arith.constant 7 : i32
    %7 = arith.addi %c0_i32, %c7_i32 : i32
    %c1_i32 = arith.constant 1 : i32
    %8 = scf.for %arg7 = %c0_i32 to %7 step %c1_i32 iter_args(%arg8 = %6) -> (vector<1x64xf32>)  : i32 {
      %c0_13 = arith.constant 0 : index
      %12 = arith.index_cast %arg7 : i32 to index
      %c0_14 = arith.constant 0 : index
      %c0_15 = arith.constant 0 : index
      %13 = vector.load %arg2[%c0_13, %12, %c0_14, %c0_15] : memref<1x8x32x64xf32, #tpu.memory_space<vmem>>, vector<1x1x32x64xf32>
      %14 = vector.shape_cast %13 : vector<1x1x32x64xf32> to vector<32x64xf32>
      %c1_i32_16 = arith.constant 1 : i32
      %15 = arith.addi %arg7, %c1_i32_16 : i32
      %c0_17 = arith.constant 0 : index
      %16 = arith.index_cast %15 : i32 to index
      %c0_18 = arith.constant 0 : index
      %c0_19 = arith.constant 0 : index
      %17 = vector.load %arg2[%c0_17, %16, %c0_18, %c0_19] : memref<1x8x32x64xf32, #tpu.memory_space<vmem>>, vector<1x1x32x64xf32>
      %18 = vector.shape_cast %17 : vector<1x1x32x64xf32> to vector<32x64xf32>
      %19 = arith.mulf %18, %18 : vector<32x64xf32>
      %cst_20 = arith.constant dense<0.000000e+00> : vector<64xf32>
      %20 = vector.multi_reduction <add>, %19, %cst_20 [0] : vector<32x64xf32> to vector<64xf32>
      %21 = vector.shape_cast %20 : vector<64xf32> to vector<1x64xf32>
      %22 = arith.mulf %14, %18 : vector<32x64xf32>
      %cst_21 = arith.constant dense<0.000000e+00> : vector<64xf32>
      %23 = vector.multi_reduction <add>, %22, %cst_21 [0] : vector<32x64xf32> to vector<64xf32>
      %24 = vector.shape_cast %23 : vector<64xf32> to vector<1x64xf32>
      %cst_22 = arith.constant 1.000000e-16 : f32
      %25 = vector.broadcast %cst_22 : f32 to vector<1x64xf32>
      %26 = arith.maximumf %arg8, %25 : vector<1x64xf32>
      %cst_23 = arith.constant 1.000000e-16 : f32
      %27 = vector.broadcast %cst_23 : f32 to vector<1x64xf32>
      %28 = arith.maximumf %21, %27 : vector<1x64xf32>
      %29 = arith.mulf %26, %28 : vector<1x64xf32>
      %30 = math.rsqrt %29 : vector<1x64xf32>
      %31 = arith.mulf %24, %30 : vector<1x64xf32>
      %cst_24 = arith.constant 1.000000e+00 : f32
      %32 = vector.broadcast %cst_24 : f32 to vector<1x64xf32>
      %33 = arith.subf %32, %31 : vector<1x64xf32>
      %34 = arith.index_cast %arg7 : i32 to index
      %c0_25 = arith.constant 0 : index
      %35 = vector.load %arg6[%34, %c0_25] : memref<8x64xf32, #tpu.memory_space<vmem>>, vector<1x64xf32>
      tpu.vector_store %arg6[%34, %c0_25], %33 {strides = array<i32>} : memref<8x64xf32, #tpu.memory_space<vmem>>, vector<1x64xf32>,
      scf.yield %21 : vector<1x64xf32>
    }
    %c7_i32_7 = arith.constant 7 : i32
    %c6 = arith.constant 6 : index
    %c0_8 = arith.constant 0 : index
    %9 = vector.load %arg6[%c6, %c0_8] : memref<8x64xf32, #tpu.memory_space<vmem>>, vector<1x64xf32>
    %c7 = arith.constant 7 : index
    %c0_9 = arith.constant 0 : index
    %10 = vector.load %arg6[%c7, %c0_9] : memref<8x64xf32, #tpu.memory_space<vmem>>, vector<1x64xf32>
    tpu.vector_store %arg6[%c7, %c0_9], %9 {strides = array<i32>} : memref<8x64xf32, #tpu.memory_space<vmem>>, vector<1x64xf32>,
    %c0_i32_10 = arith.constant 0 : i32
    %c8_i32 = arith.constant 8 : i32
    %11 = arith.addi %c0_i32_10, %c8_i32 : i32
    %c1_i32_11 = arith.constant 1 : i32
    scf.for %arg7 = %c0_i32_10 to %11 step %c1_i32_11  : i32 {
      %c0_13 = arith.constant 0 : index
      %12 = arith.index_cast %arg7 : i32 to index
      %c0_14 = arith.constant 0 : index
      %c0_15 = arith.constant 0 : index
      %13 = vector.load %arg2[%c0_13, %12, %c0_14, %c0_15] : memref<1x8x32x64xf32, #tpu.memory_space<vmem>>, vector<1x1x32x64xf32>
      %14 = vector.shape_cast %13 : vector<1x1x32x64xf32> to vector<32x64xf32>
      %15 = arith.index_cast %arg7 : i32 to index
      %c0_16 = arith.constant 0 : index
      %16 = vector.load %arg6[%15, %c0_16] : memref<8x64xf32, #tpu.memory_space<vmem>>, vector<1x64xf32>
      %17 = vector.broadcast %16 : vector<1x64xf32> to vector<32x64xf32>
      %18 = arith.mulf %14, %17 : vector<32x64xf32>
      %cst_17 = arith.constant dense<0.000000e+00> : vector<32x64xf32>
      %19 = tpu.matmul %0, %18, %cst_17 {dimension_numbers = #tpu.dot_dimension_numbers<[1], [0], [0], [1], [0, 0, 1, 1], [], []>} : vector<32x32xf32>, vector<32x64xf32>, vector<32x64xf32> -> vector<32x64xf32>
      %20 = vector.broadcast %1 : vector<32x1xf32> to vector<32x64xf32>
      %21 = arith.addf %19, %20 : vector<32x64xf32>
      %22 = arith.addf %21, %14 : vector<32x64xf32>
      %c0_18 = arith.constant 0 : index
      %23 = arith.index_cast %arg7 : i32 to index
      %c0_19 = arith.constant 0 : index
      %c0_20 = arith.constant 0 : index
      %24 = vector.load %arg5[%c0_18, %23, %c0_19, %c0_20] : memref<1x8x32x64xf32, #tpu.memory_space<vmem>>, vector<1x1x32x64xf32>
      %25 = vector.shape_cast %24 : vector<1x1x32x64xf32> to vector<32x64xf32>
      %26 = vector.shape_cast %22 : vector<32x64xf32> to vector<1x1x32x64xf32>
      tpu.vector_store %arg5[%c0_18, %23, %c0_19, %c0_20], %26 {strides = array<i32>} : memref<1x8x32x64xf32, #tpu.memory_space<vmem>>, vector<1x1x32x64xf32>,
    }
    %c8_i32_12 = arith.constant 8 : i32
    return
  }
  func.func @transform_0(%arg0: i32, %arg1: i32) -> (i32, i32, i32, i32) {
    %c0_i32 = arith.constant 0 : i32
    %c0_i32_0 = arith.constant 0 : i32
    %c0_i32_1 = arith.constant 0 : i32
    return %arg0, %c0_i32, %c0_i32_0, %arg1 : i32, i32, i32, i32
  }
  func.func @transform_1(%arg0: i32, %arg1: i32) -> (i32, i32) {
    %c0_i32 = arith.constant 0 : i32
    %c0_i32_0 = arith.constant 0 : i32
    %c0_i32_1 = arith.constant 0 : i32
    return %c0_i32, %c0_i32_0 : i32, i32
  }
  func.func @transform_2(%arg0: i32, %arg1: i32) -> (i32, i32) {
    %c0_i32 = arith.constant 0 : i32
    %c0_i32_0 = arith.constant 0 : i32
    %c0_i32_1 = arith.constant 0 : i32
    return %c0_i32, %c0_i32_0 : i32, i32
  }
  func.func @transform_3(%arg0: i32, %arg1: i32) -> (i32, i32, i32, i32) {
    %c0_i32 = arith.constant 0 : i32
    %c0_i32_0 = arith.constant 0 : i32
    %c0_i32_1 = arith.constant 0 : i32
    return %arg0, %c0_i32, %c0_i32_0, %arg1 : i32, i32, i32, i32
  }
}

</mosaic_0001>

<llo_original>
// kernel: tpu_custom_call.1
$region0: #{tpu_custom_call.1}
  #allocation0 [shape = 'u32[]', space=smem, size = 0x4, offset = 0x4, fixed_abs, tag = 'smem constant byte address 0x4 - core index']
  #allocation1 [shape = 'u32[144,128]{1,0:T(1,128)}', space=vmem, size = 0x12000, scoped, tag = 'internal scratch']
  #allocation2 [shape = 'f32[8,64]{1,0:T(8,128)}', space=vmem, size = 0x1000, scoped, tag = 'scratch operand']
  %s0 = inlined_call_operand.hbm [shape: f32[2,8,32,64], index: 0, kind: input, shape index: {}]
  %s1 = inlined_call_operand.vmem [shape: f32[32,32], index: 1, kind: input, shape index: {}]
  %s2 = inlined_call_operand.vmem [shape: f32[32,1], index: 2, kind: input, shape index: {}]
  %s3 = inlined_call_operand.hbm [shape: f32[2,8,32,64], index: 3, kind: output, shape index: {}]
  %s4 = sld [smem:[#allocation0]]
  $region63: #{tpu_custom_call.1} parent=0
    _
  %s6 = ssub.s32 1, %s4
  %s7 = scalar_select 0, %s6, %s4
  $region1: #{tpu_custom_call.1} parent=0
    #allocation3 [shape = 'u8[262144]{0}', space=vmem, size = 0x40000, scoped, tag = 'input window, operand 0']
    #allocation4 [shape = 's32[2]{0}', space=sflag, size = 0x8, scoped, tag = 'scoped memory for tpu_custom_call.1']
    #allocation5 [shape = 's32[2]{0}', space=sflag, size = 0x8, scoped, tag = 'scoped memory for tpu_custom_call.1']
    #allocation6 [shape = 'u8[262144]{0}', space=vmem, size = 0x40000, scoped, tag = 'output window, operand 0']
    %8 = vsyncpa [#allocation4], 0
    %s9 = scalar_lea.sflag [#allocation4], 1
    %10 = vsyncpa %s9, 0
    %11 = vsyncpa [#allocation5], 0
    %s12 = scalar_lea.sflag [#allocation5], 1
    %13 = vsyncpa %s12, 0
    loop: start=0, step=1, limit=4
    $region2: #{tpu_custom_call.1} parent=1 // loop_pre_header
      _
    $region3: #{tpu_custom_call.1} parent=1 // loop_header
      %s15 = sphi 0, %s19
      %p16 = scmp.ge.s32.totalorder %s15, 4
      %s22 = sphi 0, %s34
      %s23 = sphi 0, %s30
      %s24 = sphi 0, %s22
      %s25 = sphi 0, %s23
      %s26 = sphi 0, %s24
      %s27 = sphi 0, %s25
      %s39 = sphi 0, %s41
      %s42 = sphi 0, %s39
      %s43 = sphi 0, %s42
      %s59 = sphi 0, %s43
      %s63 = sphi 0, %s63
      %s65 = sphi 0, %s63
      %s66 = sphi 0, %s65
      %s80 = sphi 0, %s66
      %s84 = sphi 0, %s84
      %s86 = sphi 0, %s84
      %s87 = sphi 0, %s86
      %s101 = sphi 0, %s87
      %s109 = sphi 0, %s111
      %s112 = sphi 0, %s109
      %s113 = sphi 0, %s112
      %s129 = sphi 0, %s113
    $region4: #{tpu_custom_call.1} parent=1 // loop_header_branch
      %18 = sbr.rel (%p16) target = $region8
    $region5: #{tpu_custom_call.1} parent=1 // loop_body
      %s20 = ssub.s32 %s15, 1
      %s21 = ssub.s32 %s15, 2
      %s28 = sadd.s32 1, %s23
      %p29 = scmp.ge.s32.totalorder %s28, 1
      %s30 = scalar_select %p29, 0, %s28
      %s31 = sadd.s32 1, %s22
      %s32 = scalar_select %p29, %s31, %s22
      %p33 = scmp.ge.s32.totalorder %s32, 2
      %s34 = scalar_select %p33, 0, %s32
      %s35 = ssub.s32 %s22, %s34
      %s36 = ssub.s32 %s23, %s30
      %s37 = sor.u32 %s35, %s36
      %p38 = scmp.eq.s32.totalorder %s37, 0
      %s40 = sadd.s32 %s39, 1
      %s41 = scalar_select %p38, %s39, %s40
      %p44 = pneg %p38
      %p45 = scmp.eq.s32.totalorder %s15, 1
      %p46 = por %p44, %p45
      %p47 = scmp.ne.s32.totalorder %s39, %s42
      %p48 = scmp.eq.s32.totalorder %s15, 0
      %p49 = por %p47, %p48
      %p50 = scmp.ne.s32.totalorder %s39, %s42
      %p51 = scmp.eq.s32.totalorder %s20, 1
      %p52 = por %p50, %p51
      %p53 = scmp.ne.s32.totalorder %s42, %s43
      %p54 = scmp.eq.s32.totalorder %s20, 0
      %p55 = por %p53, %p54
      %p56 = scmp.ne.s32.totalorder %s42, %s43
      %p57 = scmp.eq.s32.totalorder %s21, 1
      %p58 = por %p56, %p57
      %p60 = scmp.ne.s32.totalorder %s43, %s59
      %p61 = scmp.eq.s32.totalorder %s21, 0
      %p62 = por %p60, %p61
      %s64 = sadd.s32 %s63, 1
      %p67 = scmp.eq.s32.totalorder %s15, 1
      %p68 = scmp.ne.s32.totalorder %s63, %s65
      %p69 = scmp.eq.s32.totalorder %s15, 0
      %p70 = por %p68, %p69
      %p71 = scmp.ne.s32.totalorder %s63, %s65
      %p72 = scmp.eq.s32.totalorder %s20, 1
      %p73 = por %p71, %p72
      %p74 = scmp.ne.s32.totalorder %s65, %s66
      %p75 = scmp.eq.s32.totalorder %s20, 0
      %p76 = por %p74, %p75
      %p77 = scmp.ne.s32.totalorder %s65, %s66
      %p78 = scmp.eq.s32.totalorder %s21, 1
      %p79 = por %p77, %p78
      %p81 = scmp.ne.s32.totalorder %s66, %s80
      %p82 = scmp.eq.s32.totalorder %s21, 0
      %p83 = por %p81, %p82
      %s85 = sadd.s32 %s84, 1
      %p88 = scmp.eq.s32.totalorder %s15, 1
      %p89 = scmp.ne.s32.totalorder %s84, %s86
      %p90 = scmp.eq.s32.totalorder %s15, 0
      %p91 = por %p89, %p90
      %p92 = scmp.ne.s32.totalorder %s84, %s86
      %p93 = scmp.eq.s32.totalorder %s20, 1
      %p94 = por %p92, %p93
      %p95 = scmp.ne.s32.totalorder %s86, %s87
      %p96 = scmp.eq.s32.totalorder %s20, 0
      %p97 = por %p95, %p96
      %p98 = scmp.ne.s32.totalorder %s86, %s87
      %p99 = scmp.eq.s32.totalorder %s21, 1
      %p100 = por %p98, %p99
      %p102 = scmp.ne.s32.totalorder %s87, %s101
      %p103 = scmp.eq.s32.totalorder %s21, 0
      %p104 = por %p102, %p103
      %s105 = ssub.s32 %s22, %s34
      %s106 = ssub.s32 %s23, %s30
      %s107 = sor.u32 %s105, %s106
      %p108 = scmp.eq.s32.totalorder %s107, 0
      %s110 = sadd.s32 %s109, 1
      %s111 = scalar_select %p108, %s109, %s110
      %p114 = pneg %p108
      %p115 = scmp.eq.s32.totalorder %s15, 1
      %p116 = por %p114, %p115
      %p117 = scmp.ne.s32.totalorder %s109, %s112
      %p118 = scmp.eq.s32.totalorder %s15, 0
      %p119 = por %p117, %p118
      %p120 = scmp.ne.s32.totalorder %s109, %s112
      %p121 = scmp.eq.s32.totalorder %s20, 1
      %p122 = por %p120, %p121
      %p123 = scmp.ne.s32.totalorder %s112, %s113
      %p124 = scmp.eq.s32.totalorder %s20, 0
      %p125 = por %p123, %p124
      %p126 = scmp.ne.s32.totalorder %s112, %s113
      %p127 = scmp.eq.s32.totalorder %s21, 1
      %p128 = por %p126, %p127
      %p130 = scmp.ne.s32.totalorder %s113, %s129
      %p131 = scmp.eq.s32.totalorder %s21, 0
      %p132 = por %p130, %p131
      %p133 = scmp.le.s32.totalorder 1, %s15
      %p134 = scmp.lt.s32.totalorder %s15, 3
      %p135 = pnand %p133, %p134
      %p136 = pneg %p135
      // Predicated region
      $region9: #{tpu_custom_call.1} parent=5 // pred_check
        _
      $region10: #{tpu_custom_call.1} parent=5 // pred_check_branch
        %138 = sbr.rel (%p135) target = $region12
      $region11: #{tpu_custom_call.1} parent=5 // pred_region
        %s139 = ssub.s32 %s15, 1
        // Predicated region
        $region13: #{tpu_custom_call.1} parent=11 // pred_check
          %p140 = pneg %p76
        $region14: #{tpu_custom_call.1} parent=11 // pred_check_branch
          %142 = sbr.rel (%p140) target = $region16
        $region15: #{tpu_custom_call.1} parent=11 // pred_region
          _
        $region16: #{tpu_custom_call.1} parent=11 // pred_fallthru
          _
        // Predicated region
        $region17: #{tpu_custom_call.1} parent=11 // pred_check
          %p143 = pneg %p97
        $region18: #{tpu_custom_call.1} parent=11 // pred_check_branch
          %145 = sbr.rel (%p143) target = $region20
        $region19: #{tpu_custom_call.1} parent=11 // pred_region
          _
        $region20: #{tpu_custom_call.1} parent=11 // pred_fallthru
          _
      $region12: #{tpu_custom_call.1} parent=5 // pred_fallthru
        _
      %p146 = scmp.lt.s32.totalorder %s15, 2
      // Predicated region
      $region21: #{tpu_custom_call.1} parent=5 // pred_check
        %p147 = pneg %p146
      $region22: #{tpu_custom_call.1} parent=5 // pred_check_branch
        %149 = sbr.rel (%p147) target = $region24
      $region23: #{tpu_custom_call.1} parent=5 // pred_region
        // Predicated region
        $region25: #{tpu_custom_call.1} parent=23 // pred_check
          %p150 = pneg %p49
        $region26: #{tpu_custom_call.1} parent=23 // pred_check_branch
          %152 = sbr.rel (%p150) target = $region28
        $region27: #{tpu_custom_call.1} parent=23 // pred_region
          %s153 = sand.u32 %s39, 1
          %s154 = scalar_lea.sflag [#allocation4], %s153
          %s155 = sand.u32 %s39, 1
          %s156 = smul.addr %s155, 256
          %s157 = scalar_lea.vmem [#allocation3], %s156
          %s159 = ssub.s32 4096, 4096
          %160 = vsyncadd %s154, %s159
          %s161 = smul.addr %s22, 32
          %s162 = sadd.s32 %s23, %s161
          %s163 = smul.addr %s162, 128
          %s164 = scalar_lea.hbm %s0, %s163
          %s165 = sshll.u32 %s157, 4
          %s166 = int_to_ptr.vmem [resolvable:$true] %s165
          %171 = dma.hbm_to_vmem [thread:$0]  %s164, 4096, %s166, %s154, 128, 128, 8
        $region28: #{tpu_custom_call.1} parent=23 // pred_fallthru
          _
      $region24: #{tpu_custom_call.1} parent=5 // pred_fallthru
        _
      %p172 = scmp.le.s32.totalorder 1, %s15
      %p173 = scmp.lt.s32.totalorder %s15, 3
      %p174 = pnand %p172, %p173
      %p175 = pneg %p174
      // Predicated region
      $region29: #{tpu_custom_call.1} parent=5 // pred_check
        _
      $region30: #{tpu_custom_call.1} parent=5 // pred_check_branch
        %177 = sbr.rel (%p174) target = $region32
      $region31: #{tpu_custom_call.1} parent=5 // pred_region
        %s178 = ssub.s32 %s15, 1
        %s179 = sand.u32 %s42, 1
        %s180 = scalar_lea.sflag [#allocation4], %s179
        %s181 = sand.u32 %s42, 1
        %s182 = smul.addr %s181, 256
        %s183 = scalar_lea.vmem [#allocation3], %s182
        // Predicated region
        $region33: #{tpu_custom_call.1} parent=31 // pred_check
          %p184 = pneg %p55
        $region34: #{tpu_custom_call.1} parent=31 // pred_check_branch
          %186 = sbr.rel (%p184) target = $region36
        $region35: #{tpu_custom_call.1} parent=31 // pred_region
          %187 = dma.done %s180, 4096
        $region36: #{tpu_custom_call.1} parent=31 // pred_fallthru
          _
        %s188 = sand.u32 %s42, 1
        %s189 = scalar_lea.sflag [#allocation4], %s188
        %s190 = sand.u32 %s42, 1
        %s191 = smul.addr %s190, 256
        %s192 = scalar_lea.vmem [#allocation3], %s191
        %p193 = pneg %p55
        %p194 = pneg %p52
        %p195 = pneg %p76
        %p196 = pneg %p73
        %p197 = pneg %p97
        %p198 = pneg %p94
        %p199 = pneg %p125
        %p200 = pneg %p122
        %s201 = sand.u32 %s112, 1
        %s202 = scalar_lea.sflag [#allocation5], %s201
        %s203 = sand.u32 %s112, 1
        %s204 = smul.addr %s203, 256
        %s205 = scalar_lea.vmem [#allocation6], %s204
        %v206 = vld [vmem:[%s1] sm:$0xff]
        %v207 = vld [vmem:[%s1 + $0x8] sm:$0xff]
        %v208 = vld [vmem:[%s1 + $0x10] sm:$0xff]
        %v209 = vld [vmem:[%s1 + $0x18] sm:$0xff]
        %v210 = vld [vmem:[%s2] sm:$0xff]
        %v211 = vld [vmem:[%s2 + $0x8] sm:$0xff]
        %v212 = vld [vmem:[%s2 + $0x10] sm:$0xff]
        %v213 = vld [vmem:[%s2 + $0x18] sm:$0xff]
        %v214 = vld [vmem:[%s183] sm:$0xff]
        %v215 = vld [vmem:[%s183 + $0x8] sm:$0xff]
        %v216 = vld [vmem:[%s183 + $0x10] sm:$0xff]
        %v217 = vld [vmem:[%s183 + $0x18] sm:$0xff]
        %v218 = vmul.f32 %v214, %v214
        %v219 = vmul.f32 %v215, %v215
        %v220 = vmul.f32 %v216, %v216
        %v221 = vmul.f32 %v217, %v217
        %vm222 = vcmask 523264
        %v223 = vsel %vm222, %v218, 0.0
        %v224 = vsel %vm222, %v219, 0.0
        %v225 = vadd.f32 %v223, %v224
        %v226 = vsel %vm222, %v220, 0.0
        %v227 = vadd.f32 %v225, %v226
        %v228 = vsel %vm222, %v221, 0.0
        %v229 = vadd.f32 %v227, %v228
        %v230 = vrot.slane %v229, 4
        %v231 = vadd.f32 %v229, %v230
        %v232 = vrot.slane %v231, 2
        %v233 = vadd.f32 %v231, %v232
        %v234 = vrot.slane %v233, 1
        %v235 = vadd.f32 %v233, %v234
        loop: start=0, step=1, limit=7
        $region37: #{tpu_custom_call.1} parent=31 // loop_pre_header
          _
        $region38: #{tpu_custom_call.1} parent=31 // loop_header
          %s237 = sphi 0, %s241
          %p238 = scmp.ge.s32.totalorder %s237, 7
          %v242 = vphi %v235, %v272
        $region39: #{tpu_custom_call.1} parent=31 // loop_header_branch
          %240 = sbr.rel (%p238) target = $region43
        $region40: #{tpu_custom_call.1} parent=31 // loop_body
          %s243 = smul.u32 %s237, 32
          %s244 = scalar_lea.vmem %s183, %s243 [#allocation3]
          %v245 = vld [vmem:[%s244] sm:$0xff]
          %v246 = vld [vmem:[%s244 + $0x8] sm:$0xff]
          %v247 = vld [vmem:[%s244 + $0x10] sm:$0xff]
          %v248 = vld [vmem:[%s244 + $0x18] sm:$0xff]
          %s249 = sadd.s32 %s237, 1
          %s250 = smul.u32 %s249, 32
          %s251 = scalar_lea.vmem %s183, %s250 [#allocation3]
          %v252 = vld [vmem:[%s251] sm:$0xff]
          %v253 = vld [vmem:[%s251 + $0x8] sm:$0xff]
          %v254 = vld [vmem:[%s251 + $0x10] sm:$0xff]
          %v255 = vld [vmem:[%s251 + $0x18] sm:$0xff]
          %v256 = vmul.f32 %v252, %v252
          %v257 = vmul.f32 %v253, %v253
          %v258 = vmul.f32 %v254, %v254
          %v259 = vmul.f32 %v255, %v255
          %v260 = vsel %vm222, %v256, 0.0
          %v261 = vsel %vm222, %v257, 0.0
          %v262 = vadd.f32 %v260, %v261
          %v263 = vsel %vm222, %v258, 0.0
          %v264 = vadd.f32 %v262, %v263
          %v265 = vsel %vm222, %v259, 0.0
          %v266 = vadd.f32 %v264, %v265
          %v267 = vrot.slane %v266, 4
          %v268 = vadd.f32 %v266, %v267
          %v269 = vrot.slane %v268, 2
          %v270 = vadd.f32 %v268, %v269
          %v271 = vrot.slane %v270, 1
          %v272 = vadd.f32 %v270, %v271
          %v273 = vmul.f32 %v245, %v252
          %v274 = vmul.f32 %v246, %v253
          %v275 = vmul.f32 %v247, %v254
          %v276 = vmul.f32 %v248, %v255
          %v277 = vsel %vm222, %v273, 0.0
          %v278 = vsel %vm222, %v274, 0.0
          %v279 = vadd.f32 %v277, %v278
          %v280 = vsel %vm222, %v275, 0.0
          %v281 = vadd.f32 %v279, %v280
          %v282 = vsel %vm222, %v276, 0.0
          %v283 = vadd.f32 %v281, %v282
          %v284 = vrot.slane %v283, 4
          %v285 = vadd.f32 %v283, %v284
          %v286 = vrot.slane %v285, 2
          %v287 = vadd.f32 %v285, %v286
          %v288 = vrot.slane %v287, 1
          %v289 = vadd.f32 %v287, %v288
          %v290 = vmax.f32 %v242, 1e-16
          %v291 = vmax.f32 %v272, 1e-16
          %v292 = vmul.f32 %v290, %v291
          %v293 = vrsqrt.pop %v292
          %v294 = vmul.f32 %v289, %v293
          %v295 = vsub.f32 1.0, %v294
          %s296 = scalar_lea.vmem [#allocation2], %s237
          %vm297 = vcmask 516096
          %298 = vst.msk [vmem:[%s296] sm:$0x1] %vm297, %v295
        $region41: #{tpu_custom_call.1} parent=31 // loop_footer
          %s241 = sadd.s32 1, %s237
        $region42: #{tpu_custom_call.1} parent=31 // loop_footer_branch
          %236 = sbr.rel target = $region38
        $region43: #{tpu_custom_call.1} parent=31 // loop_exit
          _
        %v299 = vld [vmem:[#allocation2 + $0x6] sm:$0x1]
        %vm300 = vcmask 516096
        %301 = vst.msk [vmem:[#allocation2 + $0x7] sm:$0x1] %vm300, %v299
        loop: start=0, step=1, limit=8
        $region44: #{tpu_custom_call.1} parent=31 // loop_pre_header
          _
        $region45: #{tpu_custom_call.1} parent=31 // loop_header
          %s303 = sphi 0, %s307
          %p304 = scmp.ge.s32.totalorder %s303, 8
        $region46: #{tpu_custom_call.1} parent=31 // loop_header_branch
          %306 = sbr.rel (%p304) target = $region50
        $region47: #{tpu_custom_call.1} parent=31 // loop_body
          %s308 = smul.u32 %s303, 32
          %s309 = scalar_lea.vmem %s183, %s308 [#allocation3]
          %v310 = vld [vmem:[%s309] sm:$0xff]
          %v311 = vld [vmem:[%s309 + $0x8] sm:$0xff]
          %v312 = vld [vmem:[%s309 + $0x10] sm:$0xff]
          %v313 = vld [vmem:[%s309 + $0x18] sm:$0xff]
          %s314 = scalar_lea.vmem [#allocation2], %s303
          %v315 = vld [vmem:[%s314] sm:$0x1]
          %v316 = vlaneseq
          %v317 = vshrl.u32 %v316, 7
          %v318 = vsub.s32 0, %v317
          %v319 = vrot.slane %v315, %v318
          %v320 = vmul.f32 %v310, %v319
          %v321 = vmul.f32 %v311, %v319
          %v322 = vmul.f32 %v312, %v319
          %v323 = vmul.f32 %v313, %v319
          %325 = vset.pattern.permute.xlu0 0
          %326 = vperm.xlu0 %325, %v210
          %v327 = vpop.permute.xlu0 %326
          %330 = vset.pattern.permute.xlu0 0
          %331 = vperm.xlu0 %330, %v211
          %v332 = vpop.permute.xlu0 %331
          %335 = vset.pattern.permute.xlu0 0
          %336 = vperm.xlu0 %335, %v212
          %v337 = vpop.permute.xlu0 %336
          %340 = vset.pattern.permute.xlu0 0
          %341 = vperm.xlu0 %340, %v213
          %v342 = vpop.permute.xlu0 %341
          %vm344 = vcmask 261120
          %v346 = vsel %vm344, %v206, 0
          %v349 = vsel %vm344, %v207, 0
          %v352 = vsel %vm344, %v208, 0
          %v355 = vsel %vm344, %v209, 0
          %357 = vmatprep.subr.mxu0 0.0
          %358 = vmatpush1.msra.mxu0 0.0
          %359 = vmatprep.subr.mxu0 0.0
          %360 = vmatpush1.msra.mxu0 0.0
          %361 = vmatprep.subr.mxu0 0.0
          %362 = vmatpush1.msra.mxu0 0.0
          %363 = vmatprep.subr.mxu0 0.0
          %364 = vmatpush1.msra.mxu0 0.0
          %365 = vmatprep.subr.mxu0 0.0
          %366 = vmatpush1.msra.mxu0 0.0
          %367 = vmatprep.subr.mxu0 0.0
          %368 = vmatpush1.msra.mxu0 0.0
          %369 = vmatprep.subr.mxu0 0.0
          %370 = vmatpush1.msra.mxu0 0.0
          %371 = vmatprep.subr.mxu0 0.0
          %372 = vmatpush1.msra.mxu0 0.0
          %373 = vmatprep.subr.mxu0 0.0
          %374 = vmatpush1.msra.mxu0 0.0
          %375 = vmatprep.subr.mxu0 0.0
          %376 = vmatpush1.msra.mxu0 0.0
          %377 = vmatprep.subr.mxu0 0.0
          %378 = vmatpush1.msra.mxu0 0.0
          %379 = vmatprep.subr.mxu0 0.0
          %380 = vmatpush1.msra.mxu0 0.0
          %381 = vmatprep.subr.mxu0 0.0
          %382 = vmatpush1.msra.mxu0 %v323
          %383 = vmatprep.subr.mxu0 0.0
          %384 = vmatpush1.msra.mxu0 %v322
          %385 = vmatprep.subr.mxu0 0.0
          %386 = vmatpush1.msra.mxu0 %v321
          %387 = vmatprep.subr.mxu0 0.0
          %388 = vmatpush1.msra.mxu0 %v320
          %389 = vmatprep.subr.mxu0 0.0
          %390 = vmatpush2.msra.mxu0 0.0
          %391 = vmatprep.subr.mxu0 0.0
          %392 = vmatpush2.msra.mxu0 0.0
          %393 = vmatprep.subr.mxu0 0.0
          %394 = vmatpush2.msra.mxu0 0.0
          %395 = vmatprep.subr.mxu0 0.0
          %396 = vmatpush2.msra.mxu0 0.0
          %397 = vmatprep.subr.mxu0 0.0
          %398 = vmatpush2.msra.mxu0 0.0
          %399 = vmatprep.subr.mxu0 0.0
          %400 = vmatpush2.msra.mxu0 0.0
          %401 = vmatprep.subr.mxu0 0.0
          %402 = vmatpush2.msra.mxu0 0.0
          %403 = vmatprep.subr.mxu0 0.0
          %404 = vmatpush2.msra.mxu0 0.0
          %405 = vmatprep.subr.mxu0 0.0
          %406 = vmatpush2.msra.mxu0 0.0
          %407 = vmatprep.subr.mxu0 0.0
          %408 = vmatpush2.msra.mxu0 0.0
          %409 = vmatprep.subr.mxu0 0.0
          %410 = vmatpush2.msra.mxu0 0.0
          %411 = vmatprep.subr.mxu0 0.0
          %412 = vmatpush2.msra.mxu0 0.0
          %413 = vmatprep.subr.mxu0 0.0
          %414 = vmatpush2.msra.mxu0 0.0
          %415 = vmatprep.subr.mxu0 0.0
          %416 = vmatpush2.msra.mxu0 0.0
          %417 = vmatprep.subr.mxu0 0.0
          %418 = vmatpush2.msra.mxu0 0.0
          %419 = vmatprep.subr.mxu0 0.0
          %420 = vmatpush2.msra.mxu0 0.0
          %421 = vmatprep.mubr.f32.mxu0 0.0
          %422 = vmatmul.mubr.f32.gmra.mxu0 %v346
          %v423 = vpop.f32.mrf.mxu0
          %v424 = vadd.f32 %v327, %v423
          %v425 = vpop.f32.mrf.mxu0
          %426 = vmatprep.mubr.f32.mxu0 0.0
          %427 = vmatmul.mubr.f32.gmra.mxu0 %v349
          %v428 = vpop.f32.mrf.mxu0
          %v429 = vadd.f32 %v332, %v428
          %v430 = vpop.f32.mrf.mxu0
          %431 = vmatprep.mubr.f32.mxu0 0.0
          %432 = vmatmul.mubr.f32.gmra.mxu0 %v352
          %v433 = vpop.f32.mrf.mxu0
          %v434 = vadd.f32 %v337, %v433
          %v435 = vpop.f32.mrf.mxu0
          %436 = vmatprep.mubr.f32.mxu0 0.0
          %437 = vmatmul.mubr.f32.gmra.mxu0 %v355
          %v438 = vpop.f32.mrf.mxu0
          %v439 = vadd.f32 %v342, %v438
          %v440 = vpop.f32.mrf.mxu0
          %441 = vdwg.mxu0
          %v442 = vadd.f32 %v424, %v310
          %v443 = vadd.f32 %v429, %v311
          %v444 = vadd.f32 %v434, %v312
          %v445 = vadd.f32 %v439, %v313
          %s446 = scalar_lea.vmem %s205, %s308 [#allocation6]
          %447 = vst.msk [vmem:[%s446] sm:$0xff] %vm222, %v442
          %448 = vst.msk [vmem:[%s446 + $0x8] sm:$0xff] %vm222, %v443
          %449 = vst.msk [vmem:[%s446 + $0x10] sm:$0xff] %vm222, %v444
          %450 = vst.msk [vmem:[%s446 + $0x18] sm:$0xff] %vm222, %v445
        $region48: #{tpu_custom_call.1} parent=31 // loop_footer
          %s307 = sadd.s32 1, %s303
        $region49: #{tpu_custom_call.1} parent=31 // loop_footer_branch
          %302 = sbr.rel target = $region45
        $region50: #{tpu_custom_call.1} parent=31 // loop_exit
          _
        %s451 = sand.u32 %s112, 1
        %s452 = scalar_lea.sflag [#allocation5], %s451
        %s453 = sand.u32 %s112, 1
        %s454 = smul.addr %s453, 256
        %s455 = scalar_lea.vmem [#allocation6], %s454
        // Predicated region
        $region51: #{tpu_custom_call.1} parent=31 // pred_check
          %p456 = pneg %p122
        $region52: #{tpu_custom_call.1} parent=31 // pred_check_branch
          %458 = sbr.rel (%p456) target = $region54
        $region53: #{tpu_custom_call.1} parent=31 // pred_region
          %s460 = ssub.s32 4096, 4096
          %461 = vsyncadd %s452, %s460
          %s462 = smul.addr %s24, 32
          %s463 = sadd.s32 %s25, %s462
          %s464 = smul.addr %s463, 128
          %s465 = scalar_lea.hbm %s3, %s464
          %s466 = sshll.u32 %s455, 4
          %s467 = int_to_ptr.vmem [resolvable:$true] %s466
          %472 = dma.vmem_to_hbm [thread:$0]  %s467, 4096, %s465, %s452, 128, 128, 8
        $region54: #{tpu_custom_call.1} parent=31 // pred_fallthru
          _
      $region32: #{tpu_custom_call.1} parent=5 // pred_fallthru
        _
      %p473 = scmp.le.s32.totalorder 2, %s15
      // Predicated region
      $region55: #{tpu_custom_call.1} parent=5 // pred_check
        %p474 = pneg %p473
      $region56: #{tpu_custom_call.1} parent=5 // pred_check_branch
        %476 = sbr.rel (%p474) target = $region58
      $region57: #{tpu_custom_call.1} parent=5 // pred_region
        %s477 = ssub.s32 %s15, 2
        // Predicated region
        $region59: #{tpu_custom_call.1} parent=57 // pred_check
          %p478 = pneg %p128
        $region60: #{tpu_custom_call.1} parent=57 // pred_check_branch
          %480 = sbr.rel (%p478) target = $region62
        $region61: #{tpu_custom_call.1} parent=57 // pred_region
          %s481 = sand.u32 %s113, 1
          %s482 = scalar_lea.sflag [#allocation5], %s481
          %s483 = sand.u32 %s113, 1
          %s484 = smul.addr %s483, 256
          %s485 = scalar_lea.vmem [#allocation6], %s484
          %486 = dma.done %s482, 4096
        $region62: #{tpu_custom_call.1} parent=57 // pred_fallthru
          _
      $region58: #{tpu_custom_call.1} parent=5 // pred_fallthru
        _
    $region6: #{tpu_custom_call.1} parent=1 // loop_footer
      %s19 = sadd.s32 1, %s15
    $region7: #{tpu_custom_call.1} parent=1 // loop_footer_branch
      %14 = sbr.rel target = $region3
    $region8: #{tpu_custom_call.1} parent=1 // loop_exit
      _
    %487 = vsyncpa [#allocation4], 1
    %s488 = scalar_lea.sflag [#allocation4], 1
    %489 = vsyncpa %s488, 1
    %490 = vsyncpa [#allocation5], 1
    %s491 = scalar_lea.sflag [#allocation5], 1
    %492 = vsyncpa %s491, 1

</llo_original>
